<compile_context>
chip_gen: v7x
topology: tpu7x:2x2x1
jax: 0.10.0
libtpu: 0.0.40
codegen_flags: <defaults>
</compile_context>

<pallas_src>
import jax
import jax.numpy as jnp
from jax.experimental import pallas as pl
from jax.experimental.pallas import tpu as pltpu


def _vmem_limit_bytes():
    cap = 64 * 1024 * 1024  # conservative default = v7x per-core VMEM
    try:
        cap = int(pltpu.get_tpu_info().vmem_capacity_bytes)
    except Exception:
        pass
    return int(cap * 3 // 4)  # headroom for compiler scratch / metadata


def _num_tensorcores():
    """Best-effort TensorCores-per-device query; defaults to 1 (v5e/v6e)."""
    try:
        info = pltpu.get_tpu_info()
        for name in ("num_cores", "num_tensorcores", "tensor_cores_per_chip", "core_count"):
            v = getattr(info, name, None)
            if isinstance(v, int) and 1 <= v <= 8:
                return v
    except Exception:
        pass
    try:
        v = getattr(jax.devices()[0], "num_cores", None)
        if isinstance(v, int) and 1 <= v <= 8:
            return v
    except Exception:
        pass
    return 1


def _make_kernel(weights, *, two_axis, nb_per_core, tb, b_true, needs_mask):
    w0, w1, w2 = (float(w) for w in weights)
    tiny = float(jnp.finfo(jnp.float32).tiny)

    def kernel(yp_ref, yt_ref, out_ref):
        if two_axis:
            c, b = pl.program_id(0), pl.program_id(1)
        else:
            c, b = 0, pl.program_id(0)

        yp = yp_ref[...].astype(jnp.float32)   # (TB, N, M)
        yt = yt_ref[...].astype(jnp.float32)

        # One shared shift per (N, M) matrix -> a single full-block exp feeds both
        # softmax denominators (EUP is the binding unit on v6e/v7x).
        m_g = jnp.max(jnp.max(yp, axis=2, keepdims=True), axis=1, keepdims=True)
        sh = yp - m_g
        e = jnp.exp(sh)                                   # in (0, 1]

        # Epsilon-guarded denominators (see header note on the pathological case).
        s1 = jnp.maximum(jnp.sum(e, axis=1, keepdims=True), tiny)   # (TB, 1, M) softmax over dim=1
        s2 = jnp.maximum(jnp.sum(e, axis=2, keepdims=True), tiny)   # (TB, N, 1) softmax over dim=2
        r1 = pl.reciprocal(s1, approx=False)   # one reciprocal per column/row, not per element
        r2 = pl.reciprocal(s2, approx=False)

        y1 = e * r1
        y2 = e * r2

        # log(y) straight from the log-softmax identity (no extra full-block log);
        # 1 - y as (s - e)/s is exactly >= 0, so log never sees a negative argument.
        log_y1 = jnp.maximum(sh - jnp.log(s1), -100.0)
        log_y2 = jnp.maximum(sh - jnp.log(s2), -100.0)
        log_1my1 = jnp.maximum(jnp.log((s1 - e) * r1), -100.0)
        log_1my2 = jnp.maximum(jnp.log((s2 - e) * r2), -100.0)

        # BCE elementwise: -(t*log(y) + (1-t)*log(1-y)) = -(l1m + t*(ly - l1m))
        bce1 = -(log_1my1 + yt * (log_y1 - log_1my1))
        bce2 = -(log_1my2 + yt * (log_y2 - log_1my2))
        diff = y1 - y2
        combined = w0 * bce1 + w1 * bce2 + w2 * (diff * diff)

        if needs_mask:
            # Ragged batch tail: discard rows past the true batch with a select
            # (not a multiply) so garbage exp/log values from the partial edge
            # block never leak into the sum.
            base = (c * nb_per_core + b) * tb
            row = jax.lax.broadcasted_iota(jnp.int32, combined.shape, 0) + base
            combined = jnp.where(row < b_true, combined, 0.0)

        # Leading-dim sum only (cheap VPU adds); no cross-lane reduce per step.
        partial = jnp.sum(combined, axis=0, keepdims=True)   # (1, N, M)

        @pl.when(b == 0)
        def _():
            out_ref[...] = jnp.zeros_like(out_ref)

        out_ref[...] += partial

    return kernel


def association_loss_pallas(y_pred, y_true, weights, *,
                            target_block_bytes=8 * 1024 * 1024,
                            input_dtype=None):
    """AssociationLoss forward (reduction='mean') as a Pallas TPU kernel.

    Pass input_dtype=jnp.bfloat16 on HBM-bound chips (v5e) to halve input
    traffic; in-kernel math is always f32.
    """
    assert y_pred.shape == y_true.shape
    if input_dtype is not None:
        y_pred = y_pred.astype(input_dtype)
        y_true = y_true.astype(input_dtype)

    B, N, M = y_pred.shape
    vmem_limit = _vmem_limit_bytes()
    ncores = _num_tensorcores()

    # TB sizing: MB-scale DMA blocks, bounded by a VMEM budget that counts BOTH the
    # 2x2 pipeline buffers AND ~8 live full-block f32 temporaries the compiler
    # materializes for the kernel body (the latter is what bites on v7x's 64 MiB).
    in_row_bytes = N * M * (y_pred.dtype.itemsize + y_true.dtype.itemsize)
    pipeline_row_bytes = 2 * in_row_bytes            # double-buffered inputs
    tmp_row_bytes = 8 * 4 * N * M                    # ~8 live (TB, N, M) f32 temps
    tb_fit = max(1, vmem_limit // (pipeline_row_bytes + tmp_row_bytes))
    tb_target = max(1, target_block_bytes // (N * M * y_pred.dtype.itemsize))
    TB = int(max(1, min(tb_target, tb_fit, pl.cdiv(B, ncores))))

    n_blocks = int(pl.cdiv(B, TB))
    two_axis = ncores > 1
    if two_axis:
        NB = int(pl.cdiv(n_blocks, ncores))
        grid = (ncores, NB)
        semantics = ("parallel", "arbitrary")
        last_block = n_blocks - 1
        if ncores * NB > n_blocks:
            # Grid steps past the last real block re-read it (clamped index) and
            # are fully masked inside the kernel; never issues an OOB DMA.
            in_map = lambda c, b: (jnp.minimum(c * NB + b, last_block), 0, 0)
        else:
            in_map = lambda c, b: (c * NB + b, 0, 0)
        out_map = lambda c, b: (c, 0, 0)
    else:
        # Single-TensorCore chip (v5e/v6e): no core axis, no extra writebacks.
        NB = n_blocks
        grid = (NB,)
        semantics = ("arbitrary",)
        in_map = lambda b: (b, 0, 0)
        out_map = lambda b: (0, 0, 0)

    needs_mask = (ncores * NB * TB) != B
    kernel = _make_kernel(weights, two_axis=two_axis, nb_per_core=NB, tb=TB,
                          b_true=B, needs_mask=needs_mask)

    partials = pl.pallas_call(
        kernel,
        out_shape=jax.ShapeDtypeStruct((ncores, N, M), jnp.float32),
        grid_spec=pltpu.PrefetchScalarGridSpec(
            num_scalar_prefetch=0,
            grid=grid,
            in_specs=[
                pl.BlockSpec((TB, N, M), in_map),
                pl.BlockSpec((TB, N, M), in_map),
            ],
            out_specs=pl.BlockSpec((1, N, M), out_map),
        ),
        compiler_params=pltpu.CompilerParams(
            dimension_semantics=semantics,
            vmem_limit_bytes=vmem_limit,
        ),
    )(y_pred, y_true)

    # reduction='mean' over the true element count; weights already applied per
    # element inside the kernel.
    return jnp.sum(partials) / jnp.float32(B * N * M)


def association_loss_ref(y_pred, y_true, weights):
    # Pure-JAX reference mirroring the PyTorch module (reduction='mean').
    y1 = jax.nn.softmax(y_pred, axis=1)
    y2 = jax.nn.softmax(y_pred, axis=2)

    def bce(y, t):
        log_y = jnp.maximum(jnp.log(y), -100.0)
        log_1my = jnp.maximum(jnp.log(1.0 - y), -100.0)
        return -jnp.mean(t * log_y + (1.0 - t) * log_1my)

    return (weights[0] * bce(y1, y_true)
            + weights[1] * bce(y2, y_true)
            + weights[2] * jnp.mean((y1 - y2) ** 2))


if __name__ == "__main__":
    # Deterministic "parameters": the loss weights from __init__.
    weights = (0.5, 0.3, 0.2)

    key = jax.random.PRNGKey(0)
    k1, k2 = jax.random.split(key)
    # Small association-matrix shapes; B=5 is deliberately not divisible so the
    # ragged-tail / masking path is exercised whenever a multi-core split happens.
    B, N, M = 5, 8, 16
    y_pred = jax.random.normal(k1, (B, N, M), dtype=jnp.float32)
    # BCE targets must lie in [0, 1]
    y_true = jax.random.uniform(k2, (B, N, M), dtype=jnp.float32)

    loss = association_loss_pallas(y_pred, y_true, weights)
    jax.block_until_ready(loss)

    ref = association_loss_ref(y_pred, y_true, weights)
    assert jnp.allclose(loss, ref, rtol=1e-5, atol=1e-5), (loss, ref)

    print("KERNEL_OK")
</pallas_src>

<mosaic_0001>
module attributes {stable_mosaic.version = 11 : i64} {
  func.func @kernel(%arg0: i32, %arg1: memref<5x8x16xf32, #tpu.memory_space<vmem>>, %arg2: memref<5x8x16xf32, #tpu.memory_space<vmem>>, %arg3: memref<1x8x16xf32, #tpu.memory_space<vmem>>) attributes {dimension_semantics = [#tpu.dimension_semantics<arbitrary>], iteration_bounds = array<i64: 1>, scalar_prefetch = 0 : i64, scratch_operands = 0 : i64, tpu.core_type = #tpu.core_type<tc>, window_params = [{transform_indices = @transform_0, window_bounds = array<i64: 5, 8, 16>}, {transform_indices = @transform_1, window_bounds = array<i64: 5, 8, 16>}, {pipeline_mode = #tpu.pipeline_mode<synchronous>, transform_indices = @transform_2, window_bounds = array<i64: 1, 8, 16>}]} {
    %c0 = arith.constant 0 : index
    %c0_0 = arith.constant 0 : index
    %c0_1 = arith.constant 0 : index
    %0 = vector.load %arg1[%c0, %c0_0, %c0_1] : memref<5x8x16xf32, #tpu.memory_space<vmem>>, vector<5x8x16xf32>
    %c0_2 = arith.constant 0 : index
    %c0_3 = arith.constant 0 : index
    %c0_4 = arith.constant 0 : index
    %1 = vector.load %arg2[%c0_2, %c0_3, %c0_4] : memref<5x8x16xf32, #tpu.memory_space<vmem>>, vector<5x8x16xf32>
    %cst = arith.constant dense<0xFF800000> : vector<5x8xf32>
    %2 = vector.multi_reduction <maximumf>, %0, %cst [2] : vector<5x8x16xf32> to vector<5x8xf32>
    %3 = vector.shape_cast %2 : vector<5x8xf32> to vector<5x8x1xf32>
    %cst_5 = arith.constant dense<0xFF800000> : vector<5x1xf32>
    %4 = vector.multi_reduction <maximumf>, %3, %cst_5 [1] : vector<5x8x1xf32> to vector<5x1xf32>
    %5 = vector.shape_cast %4 : vector<5x1xf32> to vector<5x1x1xf32>
    %6 = vector.broadcast %5 : vector<5x1x1xf32> to vector<5x8x16xf32>
    %7 = arith.subf %0, %6 : vector<5x8x16xf32>
    %8 = math.exp %7 : vector<5x8x16xf32>
    %cst_6 = arith.constant dense<0.000000e+00> : vector<5x16xf32>
    %9 = vector.multi_reduction <add>, %8, %cst_6 [1] : vector<5x8x16xf32> to vector<5x16xf32>
    %10 = vector.shape_cast %9 : vector<5x16xf32> to vector<5x1x16xf32>
    %cst_7 = arith.constant 1.17549435E-38 : f32
    %11 = vector.broadcast %cst_7 : f32 to vector<5x1x16xf32>
    %12 = arith.maximumf %10, %11 : vector<5x1x16xf32>
    %cst_8 = arith.constant dense<0.000000e+00> : vector<5x8xf32>
    %13 = vector.multi_reduction <add>, %8, %cst_8 [2] : vector<5x8x16xf32> to vector<5x8xf32>
    %14 = vector.shape_cast %13 : vector<5x8xf32> to vector<5x8x1xf32>
    %cst_9 = arith.constant 1.17549435E-38 : f32
    %15 = vector.broadcast %cst_9 : f32 to vector<5x8x1xf32>
    %16 = arith.maximumf %14, %15 : vector<5x8x1xf32>
    %17 = tpu.reciprocal %12 : vector<5x1x16xf32> -> vector<5x1x16xf32>
    %18 = tpu.reciprocal %16 : vector<5x8x1xf32> -> vector<5x8x1xf32>
    %19 = vector.broadcast %17 : vector<5x1x16xf32> to vector<5x8x16xf32>
    %20 = arith.mulf %8, %19 : vector<5x8x16xf32>
    %21 = vector.broadcast %18 : vector<5x8x1xf32> to vector<5x8x16xf32>
    %22 = arith.mulf %8, %21 : vector<5x8x16xf32>
    %23 = math.log %12 : vector<5x1x16xf32>
    %24 = vector.broadcast %23 : vector<5x1x16xf32> to vector<5x8x16xf32>
    %25 = arith.subf %7, %24 : vector<5x8x16xf32>
    %cst_10 = arith.constant -1.000000e+02 : f32
    %26 = vector.broadcast %cst_10 : f32 to vector<5x8x16xf32>
    %27 = arith.maximumf %25, %26 : vector<5x8x16xf32>
    %28 = math.log %16 : vector<5x8x1xf32>
    %29 = vector.broadcast %28 : vector<5x8x1xf32> to vector<5x8x16xf32>
    %30 = arith.subf %7, %29 : vector<5x8x16xf32>
    %cst_11 = arith.constant -1.000000e+02 : f32
    %31 = vector.broadcast %cst_11 : f32 to vector<5x8x16xf32>
    %32 = arith.maximumf %30, %31 : vector<5x8x16xf32>
    %33 = vector.broadcast %12 : vector<5x1x16xf32> to vector<5x8x16xf32>
    %34 = arith.subf %33, %8 : vector<5x8x16xf32>
    %35 = vector.broadcast %17 : vector<5x1x16xf32> to vector<5x8x16xf32>
    %36 = arith.mulf %34, %35 : vector<5x8x16xf32>
    %37 = math.log %36 : vector<5x8x16xf32>
    %cst_12 = arith.constant -1.000000e+02 : f32
    %38 = vector.broadcast %cst_12 : f32 to vector<5x8x16xf32>
    %39 = arith.maximumf %37, %38 : vector<5x8x16xf32>
    %40 = vector.broadcast %16 : vector<5x8x1xf32> to vector<5x8x16xf32>
    %41 = arith.subf %40, %8 : vector<5x8x16xf32>
    %42 = vector.broadcast %18 : vector<5x8x1xf32> to vector<5x8x16xf32>
    %43 = arith.mulf %41, %42 : vector<5x8x16xf32>
    %44 = math.log %43 : vector<5x8x16xf32>
    %cst_13 = arith.constant -1.000000e+02 : f32
    %45 = vector.broadcast %cst_13 : f32 to vector<5x8x16xf32>
    %46 = arith.maximumf %44, %45 : vector<5x8x16xf32>
    %47 = arith.subf %27, %39 : vector<5x8x16xf32>
    %48 = arith.mulf %1, %47 : vector<5x8x16xf32>
    %49 = arith.addf %39, %48 : vector<5x8x16xf32>
    %cst_14 = arith.constant 0.000000e+00 : f32
    %50 = vector.broadcast %cst_14 : f32 to vector<5x8x16xf32>
    %51 = arith.subf %50, %49 : vector<5x8x16xf32>
    %52 = arith.subf %32, %46 : vector<5x8x16xf32>
    %53 = arith.mulf %1, %52 : vector<5x8x16xf32>
    %54 = arith.addf %46, %53 : vector<5x8x16xf32>
    %cst_15 = arith.constant 0.000000e+00 : f32
    %55 = vector.broadcast %cst_15 : f32 to vector<5x8x16xf32>
    %56 = arith.subf %55, %54 : vector<5x8x16xf32>
    %57 = arith.subf %20, %22 : vector<5x8x16xf32>
    %cst_16 = arith.constant 5.000000e-01 : f32
    %58 = vector.broadcast %cst_16 : f32 to vector<5x8x16xf32>
    %59 = arith.mulf %58, %51 : vector<5x8x16xf32>
    %cst_17 = arith.constant 3.000000e-01 : f32
    %60 = vector.broadcast %cst_17 : f32 to vector<5x8x16xf32>
    %61 = arith.mulf %60, %56 : vector<5x8x16xf32>
    %62 = arith.addf %59, %61 : vector<5x8x16xf32>
    %63 = arith.mulf %57, %57 : vector<5x8x16xf32>
    %cst_18 = arith.constant 2.000000e-01 : f32
    %64 = vector.broadcast %cst_18 : f32 to vector<5x8x16xf32>
    %65 = arith.mulf %64, %63 : vector<5x8x16xf32>
    %66 = arith.addf %62, %65 : vector<5x8x16xf32>
    %cst_19 = arith.constant dense<0.000000e+00> : vector<8x16xf32>
    %67 = vector.multi_reduction <add>, %66, %cst_19 [0] : vector<5x8x16xf32> to vector<8x16xf32>
    %68 = vector.shape_cast %67 : vector<8x16xf32> to vector<1x8x16xf32>
    %c0_i32 = arith.constant 0 : i32
    %69 = arith.cmpi eq, %arg0, %c0_i32 : i32
    %70 = arith.extui %69 : i1 to i32
    %c0_i32_20 = arith.constant 0 : i32
    %71 = arith.cmpi ne, %70, %c0_i32_20 : i32
    scf.if %71 {
      %cst_27 = arith.constant 0.000000e+00 : f32
      %75 = vector.broadcast %cst_27 : f32 to vector<1x8x16xf32>
      %c0_28 = arith.constant 0 : index
      %c0_29 = arith.constant 0 : index
      %c0_30 = arith.constant 0 : index
      %76 = vector.load %arg3[%c0_28, %c0_29, %c0_30] : memref<1x8x16xf32, #tpu.memory_space<vmem>>, vector<1x8x16xf32>
      tpu.vector_store %arg3[%c0_28, %c0_29, %c0_30], %75 {strides = array<i32>} : memref<1x8x16xf32, #tpu.memory_space<vmem>>, vector<1x8x16xf32>,
    } else {
    }
    %c0_21 = arith.constant 0 : index
    %c0_22 = arith.constant 0 : index
    %c0_23 = arith.constant 0 : index
    %72 = vector.load %arg3[%c0_21, %c0_22, %c0_23] : memref<1x8x16xf32, #tpu.memory_space<vmem>>, vector<1x8x16xf32>
    %73 = arith.addf %72, %68 : vector<1x8x16xf32>
    %c0_24 = arith.constant 0 : index
    %c0_25 = arith.constant 0 : index
    %c0_26 = arith.constant 0 : index
    %74 = vector.load %arg3[%c0_24, %c0_25, %c0_26] : memref<1x8x16xf32, #tpu.memory_space<vmem>>, vector<1x8x16xf32>
    tpu.vector_store %arg3[%c0_24, %c0_25, %c0_26], %73 {strides = array<i32>} : memref<1x8x16xf32, #tpu.memory_space<vmem>>, vector<1x8x16xf32>,
    return
  }
  func.func @transform_0(%arg0: i32) -> (i32, i32, i32) {
    %c0_i32 = arith.constant 0 : i32
    %c0_i32_0 = arith.constant 0 : i32
    %c0_i32_1 = arith.constant 0 : i32
    return %arg0, %c0_i32, %c0_i32_0 : i32, i32, i32
  }
  func.func @transform_1(%arg0: i32) -> (i32, i32, i32) {
    %c0_i32 = arith.constant 0 : i32
    %c0_i32_0 = arith.constant 0 : i32
    %c0_i32_1 = arith.constant 0 : i32
    return %arg0, %c0_i32, %c0_i32_0 : i32, i32, i32
  }
  func.func @transform_2(%arg0: i32) -> (i32, i32, i32) {
    %c0_i32 = arith.constant 0 : i32
    %c0_i32_0 = arith.constant 0 : i32
    %c0_i32_1 = arith.constant 0 : i32
    %c0_i32_2 = arith.constant 0 : i32
    return %c0_i32, %c0_i32_0, %c0_i32_1 : i32, i32, i32
  }
}

</mosaic_0001>

<llo_original>
// kernel: tpu_custom_call.1
$region0: #{tpu_custom_call.1}
  #allocation0 [shape = 'u32[]', space=smem, size = 0x4, offset = 0x4, fixed_abs, tag = 'smem constant byte address 0x4 - core index']
  #allocation1 [shape = 'u32[144,128]{1,0:T(1,128)}', space=vmem, size = 0x12000, scoped, tag = 'internal scratch']
  %s0 = inlined_call_operand.hbm [shape: f32[5,8,16], index: 0, kind: input, shape index: {}]
  %s1 = inlined_call_operand.hbm [shape: f32[5,8,16], index: 1, kind: input, shape index: {}]
  %s2 = inlined_call_operand.hbm [shape: f32[1,8,16], index: 2, kind: output, shape index: {}]
  %s3 = sld [smem:[#allocation0]]
  $region30: #{tpu_custom_call.1} parent=0
    _
  %s5 = ssub.s32 1, %s3
  %s6 = scalar_select 0, %s5, %s3
  $region1: #{tpu_custom_call.1} parent=0
    #allocation2 [shape = 'u8[20480]{0}', space=vmem, size = 0x5000, scoped, tag = 'input window, operand 0, single buffered']
    #allocation3 [shape = 's32[1]{0}', space=sflag, size = 0x4, scoped, tag = 'scoped memory for tpu_custom_call.1']
    #allocation4 [shape = 's32[1]{0}', space=sflag, size = 0x4, scoped, tag = 'scoped memory for tpu_custom_call.1']
    #allocation5 [shape = 'u8[20480]{0}', space=vmem, size = 0x5000, scoped, tag = 'input window, operand 1, single buffered']
    #allocation6 [shape = 's32[1]{0}', space=sflag, size = 0x4, scoped, tag = 'scoped memory for tpu_custom_call.1']
    #allocation7 [shape = 'u8[4096]{0}', space=vmem, size = 0x1000, scoped, tag = 'output window, operand 0, single buffered']
    %7 = vsyncpa [#allocation3], 0
    %8 = vsyncpa [#allocation6], 0
    %9 = vsyncpa [#allocation4], 0
    // Predicated region
    $region2: #{tpu_custom_call.1} parent=1 // pred_check
      _
    $region3: #{tpu_custom_call.1} parent=1 // pred_check_branch
      %11 = sbr.rel (0) target = $region5
    $region4: #{tpu_custom_call.1} parent=1 // pred_region
      %s13 = ssub.s32 640, 640
      %14 = vsyncadd [#allocation3], %s13
      %s15 = sshll.u32 [#allocation2], 4
      %s16 = int_to_ptr.vmem [resolvable:$true] %s15
      %21 = dma.hbm_to_vmem [thread:$0]  %s0, 640, %s16, [#allocation3], 128, 128, 8
    $region5: #{tpu_custom_call.1} parent=1 // pred_fallthru
      _
    // Predicated region
    $region6: #{tpu_custom_call.1} parent=1 // pred_check
      _
    $region7: #{tpu_custom_call.1} parent=1 // pred_check_branch
      %23 = sbr.rel (0) target = $region9
    $region8: #{tpu_custom_call.1} parent=1 // pred_region
      %s25 = ssub.s32 640, 640
      %26 = vsyncadd [#allocation6], %s25
      %s27 = sshll.u32 [#allocation5], 4
      %s28 = int_to_ptr.vmem [resolvable:$true] %s27
      %33 = dma.hbm_to_vmem [thread:$0]  %s1, 640, %s28, [#allocation6], 128, 128, 8
    $region9: #{tpu_custom_call.1} parent=1 // pred_fallthru
      _
    // Predicated region
    $region10: #{tpu_custom_call.1} parent=1 // pred_check
      _
    $region11: #{tpu_custom_call.1} parent=1 // pred_check_branch
      %35 = sbr.rel (0) target = $region13
    $region12: #{tpu_custom_call.1} parent=1 // pred_region
      %36 = dma.done [#allocation3], 640
    $region13: #{tpu_custom_call.1} parent=1 // pred_fallthru
      _
    // Predicated region
    $region14: #{tpu_custom_call.1} parent=1 // pred_check
      _
    $region15: #{tpu_custom_call.1} parent=1 // pred_check_branch
      %38 = sbr.rel (0) target = $region17
    $region16: #{tpu_custom_call.1} parent=1 // pred_region
      %39 = dma.done [#allocation6], 640
    $region17: #{tpu_custom_call.1} parent=1 // pred_fallthru
      _
    %v40 = vld [vmem:[#allocation2] sm:$0xff]
    %v41 = vld [vmem:[#allocation2 + $0x8] sm:$0xff]
    %v42 = vld [vmem:[#allocation2 + $0x10] sm:$0xff]
    %v43 = vld [vmem:[#allocation2 + $0x18] sm:$0xff]
    %v44 = vld [vmem:[#allocation2 + $0x20] sm:$0xff]
    %v45 = vld [vmem:[#allocation5] sm:$0xff]
    %v46 = vld [vmem:[#allocation5 + $0x8] sm:$0xff]
    %v47 = vld [vmem:[#allocation5 + $0x10] sm:$0xff]
    %v48 = vld [vmem:[#allocation5 + $0x18] sm:$0xff]
    %v49 = vld [vmem:[#allocation5 + $0x20] sm:$0xff]
    %vm50 = vcmask 130048
    %v51 = vsel %vm50, %v40, -inf
    %52 = vmax.xlane.f32.xlu0 %v51
    %v53 = vpop.xlane.xlu0 %52
    %v54 = vsel %vm50, %v41, -inf
    %55 = vmax.xlane.f32.xlu0 %v54
    %v56 = vpop.xlane.xlu0 %55
    %v57 = vsel %vm50, %v42, -inf
    %58 = vmax.xlane.f32.xlu0 %v57
    %v59 = vpop.xlane.xlu0 %58
    %v60 = vsel %vm50, %v43, -inf
    %61 = vmax.xlane.f32.xlu0 %v60
    %v62 = vpop.xlane.xlu0 %61
    %v63 = vsel %vm50, %v44, -inf
    %64 = vmax.xlane.f32.xlu0 %v63
    %v65 = vpop.xlane.xlu0 %64
    %v66 = vrot.slane %v53, 4
    %v67 = vmax.f32 %v53, %v66
    %v68 = vrot.slane %v67, 2
    %v69 = vmax.f32 %v67, %v68
    %v70 = vrot.slane %v69, 1
    %v71 = vmax.f32 %v69, %v70
    %v72 = vrot.slane %v56, 4
    %v73 = vmax.f32 %v56, %v72
    %v74 = vrot.slane %v73, 2
    %v75 = vmax.f32 %v73, %v74
    %v76 = vrot.slane %v75, 1
    %v77 = vmax.f32 %v75, %v76
    %v78 = vrot.slane %v59, 4
    %v79 = vmax.f32 %v59, %v78
    %v80 = vrot.slane %v79, 2
    %v81 = vmax.f32 %v79, %v80
    %v82 = vrot.slane %v81, 1
    %v83 = vmax.f32 %v81, %v82
    %v84 = vrot.slane %v62, 4
    %v85 = vmax.f32 %v62, %v84
    %v86 = vrot.slane %v85, 2
    %v87 = vmax.f32 %v85, %v86
    %v88 = vrot.slane %v87, 1
    %v89 = vmax.f32 %v87, %v88
    %v90 = vrot.slane %v65, 4
    %v91 = vmax.f32 %v65, %v90
    %v92 = vrot.slane %v91, 2
    %v93 = vmax.f32 %v91, %v92
    %v94 = vrot.slane %v93, 1
    %v95 = vmax.f32 %v93, %v94
    %v96 = vsub.f32 %v40, %v71
    %v97 = vsub.f32 %v41, %v77
    %v98 = vsub.f32 %v42, %v83
    %v99 = vsub.f32 %v43, %v89
    %v100 = vsub.f32 %v44, %v95
    %v101 = vmul.f32 %v96, 1.442695
    %v102 = vpow.pop %v101
    %v103 = vmul.f32 %v97, 1.442695
    %v104 = vpow.pop %v103
    %v105 = vmul.f32 %v98, 1.442695
    %v106 = vpow.pop %v105
    %v107 = vmul.f32 %v99, 1.442695
    %v108 = vpow.pop %v107
    %v109 = vmul.f32 %v100, 1.442695
    %v110 = vpow.pop %v109
    %v111 = vsel %vm50, %v102, 0.0
    %v112 = vrot.slane %v111, 4
    %v113 = vadd.f32 %v111, %v112
    %v114 = vrot.slane %v113, 2
    %v115 = vadd.f32 %v113, %v114
    %v116 = vrot.slane %v115, 1
    %v117 = vadd.f32 %v115, %v116
    %v118 = vsel %vm50, %v104, 0.0
    %v119 = vrot.slane %v118, 4
    %v120 = vadd.f32 %v118, %v119
    %v121 = vrot.slane %v120, 2
    %v122 = vadd.f32 %v120, %v121
    %v123 = vrot.slane %v122, 1
    %v124 = vadd.f32 %v122, %v123
    %v125 = vsel %vm50, %v106, 0.0
    %v126 = vrot.slane %v125, 4
    %v127 = vadd.f32 %v125, %v126
    %v128 = vrot.slane %v127, 2
    %v129 = vadd.f32 %v127, %v128
    %v130 = vrot.slane %v129, 1
    %v131 = vadd.f32 %v129, %v130
    %v132 = vsel %vm50, %v108, 0.0
    %v133 = vrot.slane %v132, 4
    %v134 = vadd.f32 %v132, %v133
    %v135 = vrot.slane %v134, 2
    %v136 = vadd.f32 %v134, %v135
    %v137 = vrot.slane %v136, 1
    %v138 = vadd.f32 %v136, %v137
    %v139 = vsel %vm50, %v110, 0.0
    %v140 = vrot.slane %v139, 4
    %v141 = vadd.f32 %v139, %v140
    %v142 = vrot.slane %v141, 2
    %v143 = vadd.f32 %v141, %v142
    %v144 = vrot.slane %v143, 1
    %v145 = vadd.f32 %v143, %v144
    %v146 = vmax.f32 %v117, 1.1754944e-38
    %v147 = vmax.f32 %v124, 1.1754944e-38
    %v148 = vmax.f32 %v131, 1.1754944e-38
    %v149 = vmax.f32 %v138, 1.1754944e-38
    %v150 = vmax.f32 %v145, 1.1754944e-38
    %151 = vadd.xlane.f32.xlu0 %v111
    %v152 = vpop.xlane.xlu0 %151
    %153 = vadd.xlane.f32.xlu0 %v118
    %v154 = vpop.xlane.xlu0 %153
    %155 = vadd.xlane.f32.xlu0 %v125
    %v156 = vpop.xlane.xlu0 %155
    %157 = vadd.xlane.f32.xlu0 %v132
    %v158 = vpop.xlane.xlu0 %157
    %159 = vadd.xlane.f32.xlu0 %v139
    %v160 = vpop.xlane.xlu0 %159
    %v161 = vmax.f32 %v152, 1.1754944e-38
    %v162 = vmax.f32 %v154, 1.1754944e-38
    %v163 = vmax.f32 %v156, 1.1754944e-38
    %v164 = vmax.f32 %v158, 1.1754944e-38
    %v165 = vmax.f32 %v160, 1.1754944e-38
    %v166 = vrcp.pop %v146
    %v167 = vrcp.pop %v147
    %v168 = vrcp.pop %v148
    %v169 = vrcp.pop %v149
    %v170 = vrcp.pop %v150
    %v171 = vrcp.pop %v161
    %v172 = vrcp.pop %v162
    %v173 = vrcp.pop %v163
    %v174 = vrcp.pop %v164
    %v175 = vrcp.pop %v165
    %v176 = vmul.f32 %v102, %v166
    %v177 = vmul.f32 %v104, %v167
    %v178 = vmul.f32 %v106, %v168
    %v179 = vmul.f32 %v108, %v169
    %v180 = vmul.f32 %v110, %v170
    %v181 = vmul.f32 %v102, %v171
    %v182 = vmul.f32 %v104, %v172
    %v183 = vmul.f32 %v106, %v173
    %v184 = vmul.f32 %v108, %v174
    %v185 = vmul.f32 %v110, %v175
    %v186 = vlog2.pop %v146
    %v187 = vmul.f32 %v186, 0.6931472
    %v188 = vlog2.pop %v147
    %v189 = vmul.f32 %v188, 0.6931472
    %v190 = vlog2.pop %v148
    %v191 = vmul.f32 %v190, 0.6931472
    %v192 = vlog2.pop %v149
    %v193 = vmul.f32 %v192, 0.6931472
    %v194 = vlog2.pop %v150
    %v195 = vmul.f32 %v194, 0.6931472
    %v196 = vsub.f32 %v96, %v187
    %v197 = vsub.f32 %v97, %v189
    %v198 = vsub.f32 %v98, %v191
    %v199 = vsub.f32 %v99, %v193
    %v200 = vsub.f32 %v100, %v195
    %v201 = vmax.f32 %v196, -100.0
    %v202 = vmax.f32 %v197, -100.0
    %v203 = vmax.f32 %v198, -100.0
    %v204 = vmax.f32 %v199, -100.0
    %v205 = vmax.f32 %v200, -100.0
    %v206 = vlog2.pop %v161
    %v207 = vmul.f32 %v206, 0.6931472
    %v208 = vlog2.pop %v162
    %v209 = vmul.f32 %v208, 0.6931472
    %v210 = vlog2.pop %v163
    %v211 = vmul.f32 %v210, 0.6931472
    %v212 = vlog2.pop %v164
    %v213 = vmul.f32 %v212, 0.6931472
    %v214 = vlog2.pop %v165
    %v215 = vmul.f32 %v214, 0.6931472
    %v216 = vsub.f32 %v96, %v207
    %v217 = vsub.f32 %v97, %v209
    %v218 = vsub.f32 %v98, %v211
    %v219 = vsub.f32 %v99, %v213
    %v220 = vsub.f32 %v100, %v215
    %v221 = vmax.f32 %v216, -100.0
    %v222 = vmax.f32 %v217, -100.0
    %v223 = vmax.f32 %v218, -100.0
    %v224 = vmax.f32 %v219, -100.0
    %v225 = vmax.f32 %v220, -100.0
    %v226 = vsub.f32 %v146, %v102
    %v227 = vsub.f32 %v147, %v104
    %v228 = vsub.f32 %v148, %v106
    %v229 = vsub.f32 %v149, %v108
    %v230 = vsub.f32 %v150, %v110
    %v231 = vmul.f32 %v226, %v166
    %v232 = vmul.f32 %v227, %v167
    %v233 = vmul.f32 %v228, %v168
    %v234 = vmul.f32 %v229, %v169
    %v235 = vmul.f32 %v230, %v170
    %v236 = vlog2.pop %v231
    %v237 = vmul.f32 %v236, 0.6931472
    %v238 = vlog2.pop %v232
    %v239 = vmul.f32 %v238, 0.6931472
    %v240 = vlog2.pop %v233
    %v241 = vmul.f32 %v240, 0.6931472
    %v242 = vlog2.pop %v234
    %v243 = vmul.f32 %v242, 0.6931472
    %v244 = vlog2.pop %v235
    %v245 = vmul.f32 %v244, 0.6931472
    %v246 = vmax.f32 %v237, -100.0
    %v247 = vmax.f32 %v239, -100.0
    %v248 = vmax.f32 %v241, -100.0
    %v249 = vmax.f32 %v243, -100.0
    %v250 = vmax.f32 %v245, -100.0
    %v251 = vsub.f32 %v161, %v102
    %v252 = vsub.f32 %v162, %v104
    %v253 = vsub.f32 %v163, %v106
    %v254 = vsub.f32 %v164, %v108
    %v255 = vsub.f32 %v165, %v110
    %v256 = vmul.f32 %v251, %v171
    %v257 = vmul.f32 %v252, %v172
    %v258 = vmul.f32 %v253, %v173
    %v259 = vmul.f32 %v254, %v174
    %v260 = vmul.f32 %v255, %v175
    %v261 = vlog2.pop %v256
    %v262 = vmul.f32 %v261, 0.6931472
    %v263 = vlog2.pop %v257
    %v264 = vmul.f32 %v263, 0.6931472
    %v265 = vlog2.pop %v258
    %v266 = vmul.f32 %v265, 0.6931472
    %v267 = vlog2.pop %v259
    %v268 = vmul.f32 %v267, 0.6931472
    %v269 = vlog2.pop %v260
    %v270 = vmul.f32 %v269, 0.6931472
    %v271 = vmax.f32 %v262, -100.0
    %v272 = vmax.f32 %v264, -100.0
    %v273 = vmax.f32 %v266, -100.0
    %v274 = vmax.f32 %v268, -100.0
    %v275 = vmax.f32 %v270, -100.0
    %v276 = vsub.f32 %v201, %v246
    %v277 = vsub.f32 %v202, %v247
    %v278 = vsub.f32 %v203, %v248
    %v279 = vsub.f32 %v204, %v249
    %v280 = vsub.f32 %v205, %v250
    %v281 = vmul.f32 %v45, %v276
    %v282 = vmul.f32 %v46, %v277
    %v283 = vmul.f32 %v47, %v278
    %v284 = vmul.f32 %v48, %v279
    %v285 = vmul.f32 %v49, %v280
    %v286 = vadd.f32 %v246, %v281
    %v287 = vadd.f32 %v247, %v282
    %v288 = vadd.f32 %v248, %v283
    %v289 = vadd.f32 %v249, %v284
    %v290 = vadd.f32 %v250, %v285
    %v291 = vsub.f32 0.0, %v286
    %v292 = vsub.f32 0.0, %v287
    %v293 = vsub.f32 0.0, %v288
    %v294 = vsub.f32 0.0, %v289
    %v295 = vsub.f32 0.0, %v290
    %v296 = vsub.f32 %v221, %v271
    %v297 = vsub.f32 %v222, %v272
    %v298 = vsub.f32 %v223, %v273
    %v299 = vsub.f32 %v224, %v274
    %v300 = vsub.f32 %v225, %v275
    %v301 = vmul.f32 %v45, %v296
    %v302 = vmul.f32 %v46, %v297
    %v303 = vmul.f32 %v47, %v298
    %v304 = vmul.f32 %v48, %v299
    %v305 = vmul.f32 %v49, %v300
    %v306 = vadd.f32 %v271, %v301
    %v307 = vadd.f32 %v272, %v302
    %v308 = vadd.f32 %v273, %v303
    %v309 = vadd.f32 %v274, %v304
    %v310 = vadd.f32 %v275, %v305
    %v311 = vsub.f32 0.0, %v306
    %v312 = vsub.f32 0.0, %v307
    %v313 = vsub.f32 0.0, %v308
    %v314 = vsub.f32 0.0, %v309
    %v315 = vsub.f32 0.0, %v310
    %v316 = vsub.f32 %v176, %v181
    %v317 = vsub.f32 %v177, %v182
    %v318 = vsub.f32 %v178, %v183
    %v319 = vsub.f32 %v179, %v184
    %v320 = vsub.f32 %v180, %v185
    %v321 = vmul.f32 %v291, 0.5
    %v322 = vmul.f32 %v292, 0.5
    %v323 = vmul.f32 %v293, 0.5
    %v324 = vmul.f32 %v294, 0.5
    %v325 = vmul.f32 %v295, 0.5
    %v326 = vmul.f32 %v311, 0.3
    %v327 = vmul.f32 %v312, 0.3
    %v328 = vmul.f32 %v313, 0.3
    %v329 = vmul.f32 %v314, 0.3
    %v330 = vmul.f32 %v315, 0.3
    %v331 = vadd.f32 %v321, %v326
    %v332 = vadd.f32 %v322, %v327
    %v333 = vadd.f32 %v323, %v328
    %v334 = vadd.f32 %v324, %v329
    %v335 = vadd.f32 %v325, %v330
    %v336 = vmul.f32 %v316, %v316
    %v337 = vmul.f32 %v317, %v317
    %v338 = vmul.f32 %v318, %v318
    %v339 = vmul.f32 %v319, %v319
    %v340 = vmul.f32 %v320, %v320
    %v341 = vmul.f32 %v336, 0.2
    %v342 = vmul.f32 %v337, 0.2
    %v343 = vmul.f32 %v338, 0.2
    %v344 = vmul.f32 %v339, 0.2
    %v345 = vmul.f32 %v340, 0.2
    %v346 = vadd.f32 %v331, %v341
    %v347 = vadd.f32 %v332, %v342
    %v348 = vadd.f32 %v333, %v343
    %v349 = vadd.f32 %v334, %v344
    %v350 = vadd.f32 %v335, %v345
    %v351 = vsel %vm50, %v346, 0.0
    %v352 = vsel %vm50, %v347, 0.0
    %v353 = vadd.f32 %v351, %v352
    %v354 = vsel %vm50, %v348, 0.0
    %v355 = vadd.f32 %v353, %v354
    %v356 = vsel %vm50, %v349, 0.0
    %v357 = vadd.f32 %v355, %v356
    %v358 = vsel %vm50, %v350, 0.0
    %v359 = vadd.f32 %v357, %v358
    %p360 = scmp.eq.s32.totalorder 0, 0
    // Predicated region
    $region18: #{tpu_custom_call.1} parent=1 // pred_check
      %p361 = pneg %p360
    $region19: #{tpu_custom_call.1} parent=1 // pred_check_branch
      %363 = sbr.rel (%p361) target = $region21
    $region20: #{tpu_custom_call.1} parent=1 // pred_region
      %364 = vst.msk [vmem:[#allocation7] sm:$0xff] %vm50, 0.0
    $region21: #{tpu_custom_call.1} parent=1 // pred_fallthru
      _
    %v365 = vld [vmem:[#allocation7] sm:$0xff]
    %v366 = vadd.f32 %v365, %v359
    %367 = vst.msk [vmem:[#allocation7] sm:$0xff] %vm50, %v366
    // Predicated region
    $region22: #{tpu_custom_call.1} parent=1 // pred_check
      _
    $region23: #{tpu_custom_call.1} parent=1 // pred_check_branch
      %369 = sbr.rel (0) target = $region25
    $region24: #{tpu_custom_call.1} parent=1 // pred_region
      %s371 = ssub.s32 128, 128
      %372 = vsyncadd [#allocation4], %s371
      %s374 = sshll.u32 [#allocation7], 4
      %s375 = int_to_ptr.vmem [resolvable:$true] %s374
      %377 = dma.vmem_to_hbm [thread:$0]  %s375, 128, %s2, [#allocation4]
    $region25: #{tpu_custom_call.1} parent=1 // pred_fallthru
      _
    // Predicated region
    $region26: #{tpu_custom_call.1} parent=1 // pred_check
      _
    $region27: #{tpu_custom_call.1} parent=1 // pred_check_branch
      %379 = sbr.rel (0) target = $region29
    $region28: #{tpu_custom_call.1} parent=1 // pred_region
      %380 = dma.done [#allocation4], 128
    $region29: #{tpu_custom_call.1} parent=1 // pred_fallthru
      _
    %381 = vsyncpa [#allocation3], 1
    %382 = vsyncpa [#allocation6], 1
    %383 = vsyncpa [#allocation4], 1

</llo_original>
